<compile_context>
chip_gen: v5e
topology: v5e:2x2
jax: 0.10.0
libtpu: 0.0.40
codegen_flags: <defaults>
</compile_context>

<pallas_src>
import jax
import jax.numpy as jnp
from jax.experimental import pallas as pl
from jax.experimental.pallas import tpu as pltpu


# ---------------------------------------------------------------------------
# Kernels
# ---------------------------------------------------------------------------
def _t2n_kernel(loc_in_ref, logvar_ref, loc_ref, scale_ref):
    # all refs: (tn, tr, L)
    loc_ref[...] = loc_in_ref[...]
    lv = logvar_ref[...].astype(jnp.float32)
    scale_ref[...] = jnp.exp(0.5 * lv).astype(scale_ref.dtype)


def _t2n_prior_kernel(loc_in_ref, logvar_ref, prior_ref, loc_ref, scale_ref):
    loc_ref[...] = loc_in_ref[...]
    lv = logvar_ref[...].astype(jnp.float32)
    scale = jnp.exp(0.5 * lv)
    scale = jnp.minimum(scale, prior_ref[...].astype(jnp.float32))
    scale_ref[...] = scale.astype(scale_ref.dtype)


# ---------------------------------------------------------------------------
# Block planning (runs at trace time, pure Python)
# ---------------------------------------------------------------------------
def _largest_divisor_at_most(x, cap):
    cap = max(1, min(x, cap))
    for d in range(cap, 0, -1):
        if x % d == 0:
            return d
    return 1


def _pick_lane_width(m, hw):
    """Lane width of the flattened per-sample half."""
    if m % 128 == 0:
        for cand in range(2048, 127, -128):
            if m % cand == 0:
                return cand
        return 128  # unreachable (m % 128 == 0)
    # Unaligned per-sample size: keep the original (ch, hw) factorization;
    # both block dims will be full extents (always legal).
    return hw


def _plan_blocks(n, ch, hw, elem_bytes, target_bytes):
    """Returns (R, L, tn, tr): per-half layout (R, L) and block tile sizes."""
    m = ch * hw
    l = _pick_lane_width(m, hw)
    r = m // l
    per_sample = m * elem_bytes

    if per_sample <= target_bytes or r < 8:
        # Whole per-sample half fits (or rows cannot be legally split):
        # tile multiple samples per block.
        tr = r
        tn_cap = max(1, target_bytes // max(per_sample, 1))
        tn = _largest_divisor_at_most(n, tn_cap)
    else:
        # Large sample: tile rows; prefer a multiple-of-8 row count that
        # divides R (no padded boundary block, no masked stores).
        tn = 1
        rows_cap = max(8, (target_bytes // (l * elem_bytes)) // 8 * 8)
        rows_cap = min(r, rows_cap)
        tr = None
        for d in range(rows_cap // 8 * 8, 7, -8):
            if r % d == 0:
                tr = d
                break
        if tr is None:
            tr = max(8, rows_cap // 8 * 8)   # padded boundary block (legal)

    # Ensure multi-TensorCore chips (v7x) see several grid steps whenever the
    # blocks are big enough that splitting them costs ~nothing.
    def n_steps(tn_, tr_):
        return pl.cdiv(n, tn_) * pl.cdiv(r, tr_)

    min_block = 1 << 20
    while (n_steps(tn, tr) < 4
           and (tn * tr * l * elem_bytes) // 2 >= min_block):
        if tn > 1:
            tn = _largest_divisor_at_most(n, max(1, tn // 2))
        else:
            new_tr = max(8, (tr // 2) // 8 * 8)
            if new_tr >= tr or new_tr > r:
                break
            tr = new_tr

    return r, l, tn, tr


def _vmem_limit_bytes():
    try:
        info = pltpu.get_tpu_info()
        vmem_cap = int(getattr(info, "vmem_capacity_bytes", 64 << 20))
    except Exception:
        vmem_cap = 64 << 20                      # conservative (v7x-sized)
    limit = min(vmem_cap * 3 // 4, 96 << 20)     # 48 MiB on v7x, 96 MiB v5e/v6e
    return int(max(limit, 32 << 20))


# ---------------------------------------------------------------------------
# Wrapper
# ---------------------------------------------------------------------------
def tensor2normal_diag_cov(x, prior_scale=None, *, target_block_bytes=(4 << 20)):
    """Pallas equivalent of Tensor2NormalDiagCov.forward.

    Args:
      x: (N, 2*Cl, *spatial) array (PyTorch NCHW convention).
      prior_scale: optional (N, Cl, *spatial) array (prior.scale).
      target_block_bytes: per-ref block-size target (exposed for testing).

    Returns:
      (loc, scale): parameters of Normal(loc, scale), each (N, Cl, *spatial).
    """
    n, c = x.shape[0], x.shape[1]
    assert c % 2 == 0, "channel dim must be even (chunk into loc|logvar)"
    ch = c // 2
    spatial = x.shape[2:]
    hw = 1
    for s in spatial:
        hw *= s

    elem_bytes = jnp.dtype(x.dtype).itemsize
    r, l, tn, tr = _plan_blocks(n, ch, hw, elem_bytes, target_block_bytes)
    grid = (pl.cdiv(n, tn), pl.cdiv(r, tr))

    # Free reshape of contiguous NCHW data: loc/logvar halves become an
    # explicit size-2 axis selected by the BlockSpec index_maps; each half is
    # flattened to a (R, L) slab with lane-dense L.
    x4 = x.reshape(n, 2, r, l)

    # Half axis is squeezed out of the kernel refs (block dim = None).
    loc_in_spec = pl.BlockSpec((tn, None, tr, l), lambda i, j: (i, 0, j, 0))
    lv_in_spec = pl.BlockSpec((tn, None, tr, l), lambda i, j: (i, 1, j, 0))
    half_spec = pl.BlockSpec((tn, tr, l), lambda i, j: (i, j, 0))

    out_shape = (
        jax.ShapeDtypeStruct((n, r, l), x.dtype),
        jax.ShapeDtypeStruct((n, r, l), x.dtype),
    )
    cparams = pltpu.CompilerParams(
        dimension_semantics=("parallel", "parallel"),
        vmem_limit_bytes=_vmem_limit_bytes())

    total = n * ch * hw
    if prior_scale is None:
        cost = pl.CostEstimate(flops=2 * total, transcendentals=total,
                               bytes_accessed=4 * total * elem_bytes)
        loc, scale = pl.pallas_call(
            _t2n_kernel,
            out_shape=out_shape,
            grid=grid,
            in_specs=[loc_in_spec, lv_in_spec],
            out_specs=(half_spec, half_spec),
            compiler_params=cparams,
            cost_estimate=cost,
        )(x4, x4)
    else:
        ps = prior_scale.reshape(n, r, l)
        cost = pl.CostEstimate(flops=3 * total, transcendentals=total,
                               bytes_accessed=5 * total * elem_bytes)
        loc, scale = pl.pallas_call(
            _t2n_prior_kernel,
            out_shape=out_shape,
            grid=grid,
            in_specs=[loc_in_spec, lv_in_spec, half_spec],
            out_specs=(half_spec, half_spec),
            compiler_params=cparams,
            cost_estimate=cost,
        )(x4, x4, ps)

    loc = loc.reshape((n, ch) + spatial)
    scale = scale.reshape((n, ch) + spatial)
    return loc, scale


# ---------------------------------------------------------------------------
# Tests
# ---------------------------------------------------------------------------
if __name__ == "__main__":
    key = jax.random.PRNGKey(0)
    k_x, k_p, k_x2, k_x3, k_x4, k_x5 = jax.random.split(key, 6)

    def ref_fwd(x, prior_scale=None):
        loc, logvar = jnp.split(x, 2, axis=1)
        scale = jnp.exp(0.5 * logvar.astype(jnp.float32))
        if prior_scale is not None:
            scale = jnp.minimum(scale, prior_scale.astype(jnp.float32))
        return loc, scale.astype(x.dtype)

    # --- basic: N=2, C=4 (=2*Cl), 16x16 NCHW feature map, no prior ---
    x = jax.random.normal(k_x, (2, 4, 16, 16), dtype=jnp.float32)
    loc, scale = tensor2normal_diag_cov(x)
    jax.block_until_ready((loc, scale))
    loc_r, scale_r = ref_fwd(x)
    assert loc.shape == (2, 2, 16, 16) and scale.shape == (2, 2, 16, 16)
    assert jnp.allclose(loc, loc_r, rtol=1e-6, atol=1e-6)
    assert jnp.allclose(scale, scale_r, rtol=1e-6, atol=1e-6)

    # --- prior path (scale = min(scale, prior.scale)) ---
    prior_scale = jax.nn.softplus(
        jax.random.normal(k_p, (2, 2, 16, 16), dtype=jnp.float32))
    loc2, scale2 = tensor2normal_diag_cov(x, prior_scale)
    jax.block_until_ready((loc2, scale2))
    loc_r2, scale_r2 = ref_fwd(x, prior_scale)
    assert jnp.allclose(loc2, loc_r2, rtol=1e-6, atol=1e-6)
    assert jnp.allclose(scale2, scale_r2, rtol=1e-6, atol=1e-6)

    # --- non-128-aligned per-sample size (7x7): full-extent fallback layout ---
    x_small = jax.random.normal(k_x2, (2, 4, 7, 7), dtype=jnp.float32)
    loc3, scale3 = tensor2normal_diag_cov(x_small)
    jax.block_until_ready((loc3, scale3))
    loc_r3, scale_r3 = ref_fwd(x_small)
    assert jnp.allclose(loc3, loc_r3, rtol=1e-6, atol=1e-6)
    assert jnp.allclose(scale3, scale_r3, rtol=1e-6, atol=1e-6)

    # --- bf16 input: f32 compute inside the kernel, cast on store ---
    x_bf = jax.random.normal(k_x3, (2, 4, 16, 16), dtype=jnp.bfloat16)
    loc4, scale4 = tensor2normal_diag_cov(x_bf)
    jax.block_until_ready((loc4, scale4))
    loc_r4, scale_r4 = ref_fwd(x_bf)
    assert loc4.dtype == jnp.bfloat16 and scale4.dtype == jnp.bfloat16
    assert jnp.allclose(loc4.astype(jnp.float32), loc_r4.astype(jnp.float32),
                        rtol=1e-2, atol=1e-2)
    assert jnp.allclose(scale4.astype(jnp.float32), scale_r4.astype(jnp.float32),
                        rtol=1e-2, atol=1e-2)

    # --- multi-block grid over the sample axis (forced tiny block target) ---
    x_big = jax.random.normal(k_x4, (2, 4, 64, 64), dtype=jnp.float32)
    loc5, scale5 = tensor2normal_diag_cov(x_big, target_block_bytes=16 << 10)
    jax.block_until_ready((loc5, scale5))
    loc_r5, scale_r5 = ref_fwd(x_big)
    assert jnp.allclose(loc5, loc_r5, rtol=1e-6, atol=1e-6)
    assert jnp.allclose(scale5, scale_r5, rtol=1e-6, atol=1e-6)

    # --- multi-block grid over the row axis (forced tiny block target) ---
    x_rows = jax.random.normal(k_x5, (1, 4, 128, 128), dtype=jnp.float32)
    loc6, scale6 = tensor2normal_diag_cov(x_rows, target_block_bytes=32 << 10)
    jax.block_until_ready((loc6, scale6))
    loc_r6, scale_r6 = ref_fwd(x_rows)
    assert jnp.allclose(loc6, loc_r6, rtol=1e-6, atol=1e-6)
    assert jnp.allclose(scale6, scale_r6, rtol=1e-6, atol=1e-6)

    print("KERNEL_OK")
</pallas_src>

<mosaic_0001>
module attributes {stable_mosaic.version = 11 : i64} {
  func.func @_t2n_kernel(%arg0: i32, %arg1: i32, %arg2: memref<2x1x1x512xf32, #tpu.memory_space<vmem>>, %arg3: memref<2x1x1x512xf32, #tpu.memory_space<vmem>>, %arg4: memref<2x1x512xf32, #tpu.memory_space<vmem>>, %arg5: memref<2x1x512xf32, #tpu.memory_space<vmem>>) attributes {dimension_semantics = [#tpu.dimension_semantics<parallel>, #tpu.dimension_semantics<parallel>], iteration_bounds = array<i64: 1, 1>, scalar_prefetch = 0 : i64, scratch_operands = 0 : i64, tpu.core_type = #tpu.core_type<tc>, window_params = [{transform_indices = @transform_0, window_bounds = array<i64: 2, 1, 1, 512>}, {transform_indices = @transform_1, window_bounds = array<i64: 2, 1, 1, 512>}, {transform_indices = @transform_2, window_bounds = array<i64: 2, 1, 512>}, {transform_indices = @transform_3, window_bounds = array<i64: 2, 1, 512>}]} {
    %c0 = arith.constant 0 : index
    %c0_0 = arith.constant 0 : index
    %c0_1 = arith.constant 0 : index
    %c0_2 = arith.constant 0 : index
    %0 = vector.load %arg2[%c0, %c0_0, %c0_1, %c0_2] : memref<2x1x1x512xf32, #tpu.memory_space<vmem>>, vector<2x1x1x512xf32>
    %1 = vector.shape_cast %0 : vector<2x1x1x512xf32> to vector<2x1x512xf32>
    %c0_3 = arith.constant 0 : index
    %c0_4 = arith.constant 0 : index
    %c0_5 = arith.constant 0 : index
    %2 = vector.load %arg4[%c0_3, %c0_4, %c0_5] : memref<2x1x512xf32, #tpu.memory_space<vmem>>, vector<2x1x512xf32>
    tpu.vector_store %arg4[%c0_3, %c0_4, %c0_5], %1 {strides = array<i32>} : memref<2x1x512xf32, #tpu.memory_space<vmem>>, vector<2x1x512xf32>,
    %c0_6 = arith.constant 0 : index
    %c0_7 = arith.constant 0 : index
    %c0_8 = arith.constant 0 : index
    %c0_9 = arith.constant 0 : index
    %3 = vector.load %arg3[%c0_6, %c0_7, %c0_8, %c0_9] : memref<2x1x1x512xf32, #tpu.memory_space<vmem>>, vector<2x1x1x512xf32>
    %4 = vector.shape_cast %3 : vector<2x1x1x512xf32> to vector<2x1x512xf32>
    %cst = arith.constant 5.000000e-01 : f32
    %5 = vector.broadcast %cst : f32 to vector<2x1x512xf32>
    %6 = arith.mulf %5, %4 : vector<2x1x512xf32>
    %7 = math.exp %6 : vector<2x1x512xf32>
    %c0_10 = arith.constant 0 : index
    %c0_11 = arith.constant 0 : index
    %c0_12 = arith.constant 0 : index
    %8 = vector.load %arg5[%c0_10, %c0_11, %c0_12] : memref<2x1x512xf32, #tpu.memory_space<vmem>>, vector<2x1x512xf32>
    tpu.vector_store %arg5[%c0_10, %c0_11, %c0_12], %7 {strides = array<i32>} : memref<2x1x512xf32, #tpu.memory_space<vmem>>, vector<2x1x512xf32>,
    return
  }
  func.func @transform_0(%arg0: i32, %arg1: i32) -> (i32, i32, i32, i32) {
    %c0_i32 = arith.constant 0 : i32
    %c0_i32_0 = arith.constant 0 : i32
    %c0_i32_1 = arith.constant 0 : i32
    return %arg0, %c0_i32, %arg1, %c0_i32_0 : i32, i32, i32, i32
  }
  func.func @transform_1(%arg0: i32, %arg1: i32) -> (i32, i32, i32, i32) {
    %c1_i32 = arith.constant 1 : i32
    %c0_i32 = arith.constant 0 : i32
    %c0_i32_0 = arith.constant 0 : i32
    return %arg0, %c1_i32, %arg1, %c0_i32 : i32, i32, i32, i32
  }
  func.func @transform_2(%arg0: i32, %arg1: i32) -> (i32, i32, i32) {
    %c0_i32 = arith.constant 0 : i32
    %c0_i32_0 = arith.constant 0 : i32
    return %arg0, %arg1, %c0_i32 : i32, i32, i32
  }
  func.func @transform_3(%arg0: i32, %arg1: i32) -> (i32, i32, i32) {
    %c0_i32 = arith.constant 0 : i32
    %c0_i32_0 = arith.constant 0 : i32
    return %arg0, %arg1, %c0_i32 : i32, i32, i32
  }
}

</mosaic_0001>

<llo_original>
// kernel: tpu_custom_call.1
$region0: #{tpu_custom_call.1}
  #allocation0 [shape = 'u32[]', space=smem, size = 0x4, offset = 0x4, fixed_abs, tag = 'smem constant byte address 0x4 - core index']
  #allocation1 [shape = 'u32[72,128]{1,0:T(1,128)}', space=vmem, size = 0x9000, scoped, tag = 'internal scratch']
  %s0 = inlined_call_operand.hbm [shape: f32[2,2,1,512], index: 0, kind: input, shape index: {}]
  %s1 = inlined_call_operand.hbm [shape: f32[2,2,1,512], index: 1, kind: input, shape index: {}]
  %s2 = inlined_call_operand.hbm [shape: f32[2,1,512], index: 2, kind: output, shape index: {0}]
  %s3 = inlined_call_operand.hbm [shape: f32[2,1,512], index: 3, kind: output, shape index: {1}]
  %4 = xla_tuple %s2, %s3
  %s5 = sld [smem:[#allocation0]]
  $region34: #{tpu_custom_call.1} parent=0
    _
  %s7 = ssub.s32 1, %s5
  %s8 = scalar_select 0, %s7, %s5
  $region1: #{tpu_custom_call.1} parent=0
    #allocation2 [shape = 'u8[4096]{0}', space=vmem, size = 0x1000, scoped, tag = 'input window, operand 0, single buffered']
    #allocation3 [shape = 's32[1]{0}', space=sflag, size = 0x4, scoped, tag = 'scoped memory for tpu_custom_call.1']
    #allocation4 [shape = 's32[1]{0}', space=sflag, size = 0x4, scoped, tag = 'scoped memory for tpu_custom_call.1']
    #allocation5 [shape = 'u8[4096]{0}', space=vmem, size = 0x1000, scoped, tag = 'input window, operand 1, single buffered']
    #allocation6 [shape = 's32[1]{0}', space=sflag, size = 0x4, scoped, tag = 'scoped memory for tpu_custom_call.1']
    #allocation7 [shape = 'u8[4096]{0}', space=vmem, size = 0x1000, scoped, tag = 'output window, operand 0, single buffered']
    #allocation8 [shape = 'u8[4096]{0}', space=vmem, size = 0x1000, scoped, tag = 'output window, operand 1, single buffered']
    #allocation9 [shape = 's32[1]{0}', space=sflag, size = 0x4, scoped, tag = 'scoped memory for tpu_custom_call.1']
    %9 = vsyncpa [#allocation3], 0
    %10 = vsyncpa [#allocation6], 0
    %11 = vsyncpa [#allocation4], 0
    %12 = vsyncpa [#allocation9], 0
    // Predicated region
    $region2: #{tpu_custom_call.1} parent=1 // pred_check
      _
    $region3: #{tpu_custom_call.1} parent=1 // pred_check_branch
      %14 = sbr.rel (0) target = $region5
    $region4: #{tpu_custom_call.1} parent=1 // pred_region
      %16 = vsyncadd [#allocation3], 0
      %s17 = sshll.u32 %s0, 4
      %s18 = int_to_ptr.hbm [resolvable:$true] %s17
      %s19 = sshll.u32 [#allocation2], 4
      %s20 = int_to_ptr.vmem [resolvable:$true] %s19
      %25 = dma.hbm_to_vmem [thread:$0]  %s18, 128, %s20, [#allocation3], 128, 64, 4
    $region5: #{tpu_custom_call.1} parent=1 // pred_fallthru
      _
    // Predicated region
    $region6: #{tpu_custom_call.1} parent=1 // pred_check
      _
    $region7: #{tpu_custom_call.1} parent=1 // pred_check_branch
      %27 = sbr.rel (0) target = $region9
    $region8: #{tpu_custom_call.1} parent=1 // pred_region
      %29 = vsyncadd [#allocation6], 0
      %s30 = scalar_lea.hbm %s1, 4
      %s31 = sshll.u32 %s30, 4
      %s32 = int_to_ptr.hbm [resolvable:$true] %s31
      %s33 = sshll.u32 [#allocation5], 4
      %s34 = int_to_ptr.vmem [resolvable:$true] %s33
      %39 = dma.hbm_to_vmem [thread:$0]  %s32, 128, %s34, [#allocation6], 128, 64, 4
    $region9: #{tpu_custom_call.1} parent=1 // pred_fallthru
      _
    // Predicated region
    $region10: #{tpu_custom_call.1} parent=1 // pred_check
      _
    $region11: #{tpu_custom_call.1} parent=1 // pred_check_branch
      %41 = sbr.rel (0) target = $region13
    $region12: #{tpu_custom_call.1} parent=1 // pred_region
      %43 = dma.done [#allocation3], 128
    $region13: #{tpu_custom_call.1} parent=1 // pred_fallthru
      _
    // Predicated region
    $region14: #{tpu_custom_call.1} parent=1 // pred_check
      _
    $region15: #{tpu_custom_call.1} parent=1 // pred_check_branch
      %45 = sbr.rel (0) target = $region17
    $region16: #{tpu_custom_call.1} parent=1 // pred_region
      %47 = dma.done [#allocation6], 128
    $region17: #{tpu_custom_call.1} parent=1 // pred_fallthru
      _
    %v48 = vld [vmem:[#allocation2] sm:$0xf]
    %v49 = vld [vmem:[#allocation2 + $0x4] sm:$0xf]
    %v50 = vlaneseq
    %vm51 = vcmp.ge.s32.totalorder %v50, 0
    %vm52 = vcmp.lt.s32.totalorder %v50, 512
    %vm53 = vmand %vm51, %vm52
    %54 = vst.msk [vmem:[#allocation7] sm:$0xf] %vm53, %v48
    %55 = vst.msk [vmem:[#allocation7 + $0x4] sm:$0xf] %vm53, %v49
    %v56 = vld [vmem:[#allocation5] sm:$0xf]
    %v57 = vld [vmem:[#allocation5 + $0x4] sm:$0xf]
    %v58 = vmul.f32 %v56, 0.5
    %v59 = vmul.f32 %v57, 0.5
    %v60 = vmul.f32 %v58, 1.442695
    %v61 = vpow.pop %v60
    %v62 = vmul.f32 %v59, 1.442695
    %v63 = vpow.pop %v62
    %64 = vst.msk [vmem:[#allocation8] sm:$0xf] %vm53, %v61
    %65 = vst.msk [vmem:[#allocation8 + $0x4] sm:$0xf] %vm53, %v63
    // Predicated region
    $region18: #{tpu_custom_call.1} parent=1 // pred_check
      _
    $region19: #{tpu_custom_call.1} parent=1 // pred_check_branch
      %67 = sbr.rel (0) target = $region21
    $region20: #{tpu_custom_call.1} parent=1 // pred_region
      %69 = vsyncadd [#allocation4], 0
      %s70 = sshll.u32 [#allocation7], 4
      %s71 = int_to_ptr.vmem [resolvable:$true] %s70
      %s72 = sshll.u32 %s2, 4
      %s73 = int_to_ptr.hbm [resolvable:$true] %s72
      %78 = dma.vmem_to_hbm [thread:$0]  %s71, 128, %s73, [#allocation4], 64, 64, 4
    $region21: #{tpu_custom_call.1} parent=1 // pred_fallthru
      _
    // Predicated region
    $region22: #{tpu_custom_call.1} parent=1 // pred_check
      _
    $region23: #{tpu_custom_call.1} parent=1 // pred_check_branch
      %80 = sbr.rel (0) target = $region25
    $region24: #{tpu_custom_call.1} parent=1 // pred_region
      %82 = vsyncadd [#allocation9], 0
      %s83 = sshll.u32 [#allocation8], 4
      %s84 = int_to_ptr.vmem [resolvable:$true] %s83
      %s85 = sshll.u32 %s3, 4
      %s86 = int_to_ptr.hbm [resolvable:$true] %s85
      %91 = dma.vmem_to_hbm [thread:$0]  %s84, 128, %s86, [#allocation9], 64, 64, 4
    $region25: #{tpu_custom_call.1} parent=1 // pred_fallthru
      _
    // Predicated region
    $region26: #{tpu_custom_call.1} parent=1 // pred_check
      _
    $region27: #{tpu_custom_call.1} parent=1 // pred_check_branch
      %93 = sbr.rel (0) target = $region29
    $region28: #{tpu_custom_call.1} parent=1 // pred_region
      %95 = dma.done [#allocation4], 128
    $region29: #{tpu_custom_call.1} parent=1 // pred_fallthru
      _
    // Predicated region
    $region30: #{tpu_custom_call.1} parent=1 // pred_check
      _
    $region31: #{tpu_custom_call.1} parent=1 // pred_check_branch
      %97 = sbr.rel (0) target = $region33
    $region32: #{tpu_custom_call.1} parent=1 // pred_region
      %99 = dma.done [#allocation9], 128
    $region33: #{tpu_custom_call.1} parent=1 // pred_fallthru
      _
    %100 = vsyncpa [#allocation3], 1
    %101 = vsyncpa [#allocation6], 1
    %102 = vsyncpa [#allocation4], 1
    %103 = vsyncpa [#allocation9], 1

</llo_original>
